<compile_context>
chip_gen: v7x
topology: tpu7x:2x2x1
jax: 0.10.0
libtpu: 0.0.40
codegen_flags: <defaults>
</compile_context>

<pallas_src>
import functools

import jax
import jax.numpy as jnp
from jax.experimental import pallas as pl
from jax.experimental.pallas import tpu as pltpu

BATCH_SIZE = 8       # constants.BATCH_SIZE stand-in
HIDDEN = 128         # _lm.config.hidden_size stand-in
DROPOUT_RATE = 0.1   # _lm.config.hidden_dropout_prob stand-in
LEAKY_SLOPE = 0.01   # nn.LeakyReLU default negative_slope

# lowbias32 hash constants (Wang/degski-style integer finaliser).
_MIX_M1 = 0x7FEB352D
_MIX_M2 = 0x846CA68B
_GOLDEN = 0x9E3779B9


def _round_up(n, m):
    return ((n + m - 1) // m) * m


def _mix32(x):
    """lowbias32 finaliser on uint32 arrays — pure VPU int ops."""
    x = x ^ (x >> 16)
    x = x * jnp.uint32(_MIX_M1)
    x = x ^ (x >> 15)
    x = x * jnp.uint32(_MIX_M2)
    x = x ^ (x >> 16)
    return x


def _uniform_bits24(seed_u32, stream, row0_u32, rows, cols):
    """Deterministic 24-bit uniforms in [0, 2^24) for global rows [row0, row0+rows).

    Pure function of (seed, stream, global element index) -> the bit stream is
    independent of how the batch is tiled, so any tile size reproduces the
    same logical randoms (and a pure-JAX reference can replay them exactly).
    """
    r = jax.lax.broadcasted_iota(jnp.int32, (rows, cols), 0).astype(jnp.uint32)
    c = jax.lax.broadcasted_iota(jnp.int32, (rows, cols), 1).astype(jnp.uint32)
    idx = (r + row0_u32) * jnp.uint32(cols) + c
    key = _mix32(seed_u32 + jnp.uint32((stream * _GOLDEN) & 0xFFFFFFFF))
    bits = _mix32(idx ^ key)
    # Keep the top 24 bits: exactly representable in f32 and safe as int32.
    return (bits >> 8).astype(jnp.int32)


def generator_kernel(seed_ref, w_ref, b_ref, o_ref, *,
                     hidden, tile_b, dropout_rate, train):
    """seed:(1,) SMEM  w:(H,2H) bf16  b:(1,2H) f32  ->  o:(tile_b,H).

    w holds [W1 | W2] pre-transposed to (in_features, out_features); b holds
    [b1 | b2].  NOTE: real PyTorch nn.Linear weights are (out, in) and must be
    transposed before packing.
    """
    H = hidden
    seed_u = seed_ref[0].astype(jnp.uint32)
    row0 = (pl.program_id(0) * tile_b).astype(jnp.uint32)

    # ---- torch.rand((B, H)) generated in-kernel: zero activation input DMA --
    ubits = _uniform_bits24(seed_u, 0, row0, tile_b, H)
    x = ubits.astype(jnp.float32) * jnp.float32(1.0 / (1 << 24))   # [0, 1)

    # ---- Linear #1: bf16 MXU matmul, f32 accumulation, f32 epilogue ---------
    h = jnp.dot(x.astype(jnp.bfloat16), w_ref[:, :H],
                preferred_element_type=jnp.float32)
    h = h + b_ref[:, :H]

    # ---- LeakyReLU (negative_slope = 0.01) -----------------------------------
    h = jnp.where(h > 0, h, LEAKY_SLOPE * h)

    # ---- Dropout: inverted-dropout mask from PRNG stream 1 -------------------
    # nn.Dropout is identity in eval mode -> gated by the static `train` flag.
    if train and dropout_rate > 0.0:
        dbits = _uniform_bits24(seed_u, 1, row0, tile_b, H)
        thresh = min(int(round(dropout_rate * (1 << 24))), 1 << 24)   # no overflow as p->1
        keep = dbits >= thresh                                        # P(keep) = 1 - p
        scale = 1.0 / (1.0 - dropout_rate) if dropout_rate < 1.0 else 0.0
        h = jnp.where(keep, h * jnp.float32(scale), jnp.float32(0.0))

    # ---- Linear #2: cast to bf16 only at the MXU boundary --------------------
    o = jnp.dot(h.astype(jnp.bfloat16), w_ref[:, H:],
                preferred_element_type=jnp.float32)
    o_ref[...] = (o + b_ref[:, H:]).astype(o_ref.dtype)


def generator_forward(seed, w_packed, b_packed, *, batch_size,
                      dropout_rate=DROPOUT_RATE, train=True,
                      out_dtype=jnp.float32):
    """w_packed:(H,2H) bf16, b_packed:(1,2H) f32 -> (batch_size, H) out_dtype."""
    H = w_packed.shape[0]
    assert w_packed.shape == (H, 2 * H) and b_packed.shape == (1, 2 * H)
    B = int(batch_size)

    # Row-tile policy:
    #   * B <= 512: single tile (B=8 production case is launch-latency bound).
    #   * B  > 512: 512-row tiles -> >= 2 grid steps so the "parallel" batch
    #     axis shards across v7x's two TensorCores while per-step output
    #     traffic stays large enough to amortize the ~0.35 us step overhead.
    if B <= 512:
        tile_b = _round_up(B, 8)                  # sublane alignment
    else:
        tile_b = 512
    pad_b = _round_up(B, tile_b)
    grid = (pad_b // tile_b,)

    seed_arr = jnp.asarray([seed], dtype=jnp.int32)
    kernel = functools.partial(generator_kernel, hidden=H, tile_b=tile_b,
                               dropout_rate=float(dropout_rate),
                               train=bool(train))

    # Weight/bias index_maps are constant -> DMA'd once, VMEM-resident across
    # all batch tiles.  Batch axis is "parallel" (shards over v7x's 2 TCs).
    out = pl.pallas_call(
        kernel,
        out_shape=jax.ShapeDtypeStruct((pad_b, H), out_dtype),
        grid_spec=pltpu.PrefetchScalarGridSpec(
            num_scalar_prefetch=1,
            grid=grid,
            in_specs=[
                pl.BlockSpec((H, 2 * H), lambda i, seed_ref: (0, 0)),
                pl.BlockSpec((1, 2 * H), lambda i, seed_ref: (0, 0)),
            ],
            out_specs=pl.BlockSpec((tile_b, H), lambda i, seed_ref: (i, 0)),
        ),
        compiler_params=pltpu.CompilerParams(
            dimension_semantics=("parallel",),
        ),
    )(seed_arr, w_packed, b_packed)
    return out[:B] if pad_b != B else out


def init_params(key, hidden):
    """nn.Linear-style init: uniform(-1/sqrt(in), 1/sqrt(in)).

    Weights are generated directly in pre-transposed (in, out) layout (the
    symmetric-uniform init is layout-invariant) and packed [W1 | W2] in bf16;
    biases are packed [b1 | b2] in f32.
    """
    k1, k2, k3, k4 = jax.random.split(key, 4)
    bound = 1.0 / jnp.sqrt(hidden)
    w1 = jax.random.uniform(k1, (hidden, hidden), jnp.float32, -bound, bound)
    b1 = jax.random.uniform(k2, (1, hidden), jnp.float32, -bound, bound)
    w2 = jax.random.uniform(k3, (hidden, hidden), jnp.float32, -bound, bound)
    b2 = jax.random.uniform(k4, (1, hidden), jnp.float32, -bound, bound)
    w_packed = jnp.concatenate([w1, w2], axis=1).astype(jnp.bfloat16)  # (H,2H)
    b_packed = jnp.concatenate([b1, b2], axis=1)                       # (1,2H)
    return w_packed, b_packed


def _reference_forward(seed, w_packed, b_packed, *, batch_size,
                       dropout_rate=DROPOUT_RATE, train=True):
    """Pure-JAX reference replaying the identical PRNG streams (train + eval)."""
    H = w_packed.shape[0]
    B = int(batch_size)
    seed_u = jnp.uint32(seed)
    ubits = _uniform_bits24(seed_u, 0, jnp.uint32(0), B, H)
    x = ubits.astype(jnp.float32) * jnp.float32(1.0 / (1 << 24))
    w1, w2 = w_packed[:, :H], w_packed[:, H:]
    b1, b2 = b_packed[:, :H], b_packed[:, H:]
    h = jnp.dot(x.astype(jnp.bfloat16), w1,
                preferred_element_type=jnp.float32) + b1
    h = jnp.where(h > 0, h, LEAKY_SLOPE * h)
    if train and dropout_rate > 0.0:
        dbits = _uniform_bits24(seed_u, 1, jnp.uint32(0), B, H)
        thresh = min(int(round(dropout_rate * (1 << 24))), 1 << 24)
        keep = dbits >= thresh
        scale = 1.0 / (1.0 - dropout_rate) if dropout_rate < 1.0 else 0.0
        h = jnp.where(keep, h * jnp.float32(scale), jnp.float32(0.0))
    o = jnp.dot(h.astype(jnp.bfloat16), w2,
                preferred_element_type=jnp.float32) + b2
    return o


if __name__ == "__main__":
    root = jax.random.PRNGKey(0)
    w_packed, b_packed = init_params(root, HIDDEN)

    # Train-mode forward: uniform inputs + dropout mask generated in-kernel.
    out_train = generator_forward(1234, w_packed, b_packed,
                                  batch_size=BATCH_SIZE,
                                  dropout_rate=DROPOUT_RATE, train=True)
    out_train = jax.block_until_ready(out_train)

    # Eval-mode forward (dropout = identity).
    out_eval = generator_forward(1234, w_packed, b_packed,
                                 batch_size=BATCH_SIZE,
                                 dropout_rate=DROPOUT_RATE, train=False)
    out_eval = jax.block_until_ready(out_eval)

    # Both modes validated against a pure-JAX reference with identical PRNG.
    ref_train = _reference_forward(1234, w_packed, b_packed,
                                   batch_size=BATCH_SIZE,
                                   dropout_rate=DROPOUT_RATE, train=True)
    ref_eval = _reference_forward(1234, w_packed, b_packed,
                                  batch_size=BATCH_SIZE,
                                  dropout_rate=DROPOUT_RATE, train=False)

    assert out_train.shape == (BATCH_SIZE, HIDDEN)
    assert out_eval.shape == (BATCH_SIZE, HIDDEN)
    assert float(jnp.max(jnp.abs(out_train - ref_train))) < 1e-2
    assert float(jnp.max(jnp.abs(out_eval - ref_eval))) < 1e-2

    # Empirical dropout sanity: train/eval differ, and inputs are in [0, 1).
    assert float(jnp.max(jnp.abs(out_train - out_eval))) > 0.0

    # Python glue matching `list(zip(list(output), [0]*len(output)))`
    output_list = list(out_train)
    output = list(zip(output_list, [0] * len(output_list)))
    assert len(output) == BATCH_SIZE and output[0][1] == 0

    print("KERNEL_OK")
</pallas_src>

<mosaic_0001>
module attributes {stable_mosaic.version = 11 : i64} {
  func.func @generator_kernel(%arg0: i32, %arg1: memref<1xi32, #tpu.memory_space<smem>>, %arg2: memref<128x256xbf16, #tpu.memory_space<vmem>>, %arg3: memref<1x256xf32, #tpu.memory_space<vmem>>, %arg4: memref<8x128xf32, #tpu.memory_space<vmem>>) attributes {dimension_semantics = [#tpu.dimension_semantics<parallel>], iteration_bounds = array<i64: 1>, scalar_prefetch = 1 : i64, scratch_operands = 0 : i64, tpu.core_type = #tpu.core_type<tc>, window_params = [{pipeline_mode = #tpu.pipeline_mode<synchronous>, transform_indices = @transform_0, window_bounds = array<i64: 128, 256>}, {pipeline_mode = #tpu.pipeline_mode<synchronous>, transform_indices = @transform_1, window_bounds = array<i64: 1, 256>}, {transform_indices = @transform_2, window_bounds = array<i64: 8, 128>}]} {
    %c0 = arith.constant 0 : index
    %0 = memref.load %arg1[%c0] : memref<1xi32, #tpu.memory_space<smem>>
    %c8_i32 = arith.constant 8 : i32
    %1 = arith.muli %arg0, %c8_i32 : i32
    %2 = tpu.iota {dimensions = array<i32: 0>} : vector<8x128xi32>
    %3 = tpu.iota {dimensions = array<i32: 1>} : vector<8x128xi32>
    %4 = vector.broadcast %1 : i32 to vector<8x128xi32>
    %5 = arith.addi %2, %4 : vector<8x128xi32>
    %c128_i32 = arith.constant 128 : i32
    %6 = vector.broadcast %c128_i32 : i32 to vector<8x128xi32>
    %7 = arith.muli %5, %6 : vector<8x128xi32>
    %8 = arith.addi %7, %3 : vector<8x128xi32>
    %c0_i32 = arith.constant 0 : i32
    %9 = arith.addi %0, %c0_i32 : i32
    %c16_i32 = arith.constant 16 : i32
    %10 = arith.shrui %9, %c16_i32 : i32
    %11 = arith.xori %9, %10 : i32
    %c2146121005_i32 = arith.constant 2146121005 : i32
    %12 = arith.muli %11, %c2146121005_i32 : i32
    %c15_i32 = arith.constant 15 : i32
    %13 = arith.shrui %12, %c15_i32 : i32
    %14 = arith.xori %12, %13 : i32
    %c-2073254261_i32 = arith.constant -2073254261 : i32
    %15 = arith.muli %14, %c-2073254261_i32 : i32
    %c16_i32_0 = arith.constant 16 : i32
    %16 = arith.shrui %15, %c16_i32_0 : i32
    %17 = arith.xori %15, %16 : i32
    %18 = vector.broadcast %17 : i32 to vector<8x128xi32>
    %19 = arith.xori %8, %18 : vector<8x128xi32>
    %c16_i32_1 = arith.constant 16 : i32
    %20 = vector.broadcast %c16_i32_1 : i32 to vector<8x128xi32>
    %21 = arith.shrui %19, %20 : vector<8x128xi32>
    %22 = arith.xori %19, %21 : vector<8x128xi32>
    %c2146121005_i32_2 = arith.constant 2146121005 : i32
    %23 = vector.broadcast %c2146121005_i32_2 : i32 to vector<8x128xi32>
    %24 = arith.muli %22, %23 : vector<8x128xi32>
    %c15_i32_3 = arith.constant 15 : i32
    %25 = vector.broadcast %c15_i32_3 : i32 to vector<8x128xi32>
    %26 = arith.shrui %24, %25 : vector<8x128xi32>
    %27 = arith.xori %24, %26 : vector<8x128xi32>
    %c-2073254261_i32_4 = arith.constant -2073254261 : i32
    %28 = vector.broadcast %c-2073254261_i32_4 : i32 to vector<8x128xi32>
    %29 = arith.muli %27, %28 : vector<8x128xi32>
    %c16_i32_5 = arith.constant 16 : i32
    %30 = vector.broadcast %c16_i32_5 : i32 to vector<8x128xi32>
    %31 = arith.shrui %29, %30 : vector<8x128xi32>
    %32 = arith.xori %29, %31 : vector<8x128xi32>
    %c8_i32_6 = arith.constant 8 : i32
    %33 = vector.broadcast %c8_i32_6 : i32 to vector<8x128xi32>
    %34 = arith.shrui %32, %33 : vector<8x128xi32>
    %35 = arith.sitofp %34 : vector<8x128xi32> to vector<8x128xf32>
    %cst = arith.constant 5.96046448E-8 : f32
    %36 = vector.broadcast %cst : f32 to vector<8x128xf32>
    %37 = arith.mulf %35, %36 : vector<8x128xf32>
    %38 = arith.truncf %37 : vector<8x128xf32> to vector<8x128xbf16>
    %c0_7 = arith.constant 0 : index
    %c0_8 = arith.constant 0 : index
    %39 = vector.load %arg2[%c0_7, %c0_8] : memref<128x256xbf16, #tpu.memory_space<vmem>>, vector<128x128xbf16>
    %cst_9 = arith.constant dense<0.000000e+00> : vector<8x128xf32>
    %40 = tpu.matmul %38, %39, %cst_9 {dimension_numbers = #tpu.dot_dimension_numbers<[1], [0], [0], [1], [0, 0, 1, 1], [], []>} : vector<8x128xbf16>, vector<128x128xbf16>, vector<8x128xf32> -> vector<8x128xf32>
    %c0_10 = arith.constant 0 : index
    %c0_11 = arith.constant 0 : index
    %41 = vector.load %arg3[%c0_10, %c0_11] : memref<1x256xf32, #tpu.memory_space<vmem>>, vector<1x128xf32>
    %42 = vector.broadcast %41 : vector<1x128xf32> to vector<8x128xf32>
    %43 = arith.addf %40, %42 : vector<8x128xf32>
    %cst_12 = arith.constant 0.000000e+00 : f32
    %44 = vector.broadcast %cst_12 : f32 to vector<8x128xf32>
    %45 = arith.cmpf ogt, %43, %44 : vector<8x128xf32>
    %cst_13 = arith.constant 0.00999999977 : f32
    %46 = vector.broadcast %cst_13 : f32 to vector<8x128xf32>
    %47 = arith.mulf %46, %43 : vector<8x128xf32>
    %48 = arith.select %45, %43, %47 : vector<8x128xi1>, vector<8x128xf32>
    %49 = tpu.iota {dimensions = array<i32: 0>} : vector<8x128xi32>
    %50 = tpu.iota {dimensions = array<i32: 1>} : vector<8x128xi32>
    %51 = vector.broadcast %1 : i32 to vector<8x128xi32>
    %52 = arith.addi %49, %51 : vector<8x128xi32>
    %c128_i32_14 = arith.constant 128 : i32
    %53 = vector.broadcast %c128_i32_14 : i32 to vector<8x128xi32>
    %54 = arith.muli %52, %53 : vector<8x128xi32>
    %55 = arith.addi %54, %50 : vector<8x128xi32>
    %c-1640531527_i32 = arith.constant -1640531527 : i32
    %56 = arith.addi %0, %c-1640531527_i32 : i32
    %c16_i32_15 = arith.constant 16 : i32
    %57 = arith.shrui %56, %c16_i32_15 : i32
    %58 = arith.xori %56, %57 : i32
    %c2146121005_i32_16 = arith.constant 2146121005 : i32
    %59 = arith.muli %58, %c2146121005_i32_16 : i32
    %c15_i32_17 = arith.constant 15 : i32
    %60 = arith.shrui %59, %c15_i32_17 : i32
    %61 = arith.xori %59, %60 : i32
    %c-2073254261_i32_18 = arith.constant -2073254261 : i32
    %62 = arith.muli %61, %c-2073254261_i32_18 : i32
    %c16_i32_19 = arith.constant 16 : i32
    %63 = arith.shrui %62, %c16_i32_19 : i32
    %64 = arith.xori %62, %63 : i32
    %65 = vector.broadcast %64 : i32 to vector<8x128xi32>
    %66 = arith.xori %55, %65 : vector<8x128xi32>
    %c16_i32_20 = arith.constant 16 : i32
    %67 = vector.broadcast %c16_i32_20 : i32 to vector<8x128xi32>
    %68 = arith.shrui %66, %67 : vector<8x128xi32>
    %69 = arith.xori %66, %68 : vector<8x128xi32>
    %c2146121005_i32_21 = arith.constant 2146121005 : i32
    %70 = vector.broadcast %c2146121005_i32_21 : i32 to vector<8x128xi32>
    %71 = arith.muli %69, %70 : vector<8x128xi32>
    %c15_i32_22 = arith.constant 15 : i32
    %72 = vector.broadcast %c15_i32_22 : i32 to vector<8x128xi32>
    %73 = arith.shrui %71, %72 : vector<8x128xi32>
    %74 = arith.xori %71, %73 : vector<8x128xi32>
    %c-2073254261_i32_23 = arith.constant -2073254261 : i32
    %75 = vector.broadcast %c-2073254261_i32_23 : i32 to vector<8x128xi32>
    %76 = arith.muli %74, %75 : vector<8x128xi32>
    %c16_i32_24 = arith.constant 16 : i32
    %77 = vector.broadcast %c16_i32_24 : i32 to vector<8x128xi32>
    %78 = arith.shrui %76, %77 : vector<8x128xi32>
    %79 = arith.xori %76, %78 : vector<8x128xi32>
    %c8_i32_25 = arith.constant 8 : i32
    %80 = vector.broadcast %c8_i32_25 : i32 to vector<8x128xi32>
    %81 = arith.shrui %79, %80 : vector<8x128xi32>
    %c1677722_i32 = arith.constant 1677722 : i32
    %82 = vector.broadcast %c1677722_i32 : i32 to vector<8x128xi32>
    %83 = arith.cmpi sge, %81, %82 : vector<8x128xi32>
    %cst_26 = arith.constant 1.11111116 : f32
    %84 = vector.broadcast %cst_26 : f32 to vector<8x128xf32>
    %85 = arith.mulf %48, %84 : vector<8x128xf32>
    %cst_27 = arith.constant 0.000000e+00 : f32
    %86 = vector.broadcast %cst_27 : f32 to vector<8x128xf32>
    %87 = arith.select %83, %85, %86 : vector<8x128xi1>, vector<8x128xf32>
    %88 = arith.truncf %87 : vector<8x128xf32> to vector<8x128xbf16>
    %c0_28 = arith.constant 0 : index
    %c128 = arith.constant 128 : index
    %89 = vector.load %arg2[%c0_28, %c128] : memref<128x256xbf16, #tpu.memory_space<vmem>>, vector<128x128xbf16>
    %cst_29 = arith.constant dense<0.000000e+00> : vector<8x128xf32>
    %90 = tpu.matmul %88, %89, %cst_29 {dimension_numbers = #tpu.dot_dimension_numbers<[1], [0], [0], [1], [0, 0, 1, 1], [], []>} : vector<8x128xbf16>, vector<128x128xbf16>, vector<8x128xf32> -> vector<8x128xf32>
    %c0_30 = arith.constant 0 : index
    %c128_31 = arith.constant 128 : index
    %91 = vector.load %arg3[%c0_30, %c128_31] : memref<1x256xf32, #tpu.memory_space<vmem>>, vector<1x128xf32>
    %92 = vector.broadcast %91 : vector<1x128xf32> to vector<8x128xf32>
    %93 = arith.addf %90, %92 : vector<8x128xf32>
    %c0_32 = arith.constant 0 : index
    %c0_33 = arith.constant 0 : index
    %94 = vector.load %arg4[%c0_32, %c0_33] : memref<8x128xf32, #tpu.memory_space<vmem>>, vector<8x128xf32>
    tpu.vector_store %arg4[%c0_32, %c0_33], %93 {strides = array<i32>} : memref<8x128xf32, #tpu.memory_space<vmem>>, vector<8x128xf32>,
    return
  }
  func.func @transform_0(%arg0: i32, %arg1: memref<1xi32, #tpu.memory_space<smem>>) -> (i32, i32) {
    %c0_i32 = arith.constant 0 : i32
    %c0_i32_0 = arith.constant 0 : i32
    %c0_i32_1 = arith.constant 0 : i32
    return %c0_i32, %c0_i32_0 : i32, i32
  }
  func.func @transform_1(%arg0: i32, %arg1: memref<1xi32, #tpu.memory_space<smem>>) -> (i32, i32) {
    %c0_i32 = arith.constant 0 : i32
    %c0_i32_0 = arith.constant 0 : i32
    %c0_i32_1 = arith.constant 0 : i32
    return %c0_i32, %c0_i32_0 : i32, i32
  }
  func.func @transform_2(%arg0: i32, %arg1: memref<1xi32, #tpu.memory_space<smem>>) -> (i32, i32) {
    %c0_i32 = arith.constant 0 : i32
    %c0_i32_0 = arith.constant 0 : i32
    return %arg0, %c0_i32 : i32, i32
  }
}

</mosaic_0001>

<llo_original>
// kernel: tpu_custom_call.1
$region0: #{tpu_custom_call.1}
  #allocation0 [shape = 'u32[]', space=smem, size = 0x4, offset = 0x4, fixed_abs, tag = 'smem constant byte address 0x4 - core index']
  #allocation1 [shape = 'u32[144,128]{1,0:T(1,128)}', space=vmem, size = 0x12000, scoped, tag = 'internal scratch']
  #allocation2 [shape = 's32[1]{0}', space=sflag, size = 0x4, scoped, tag = 'scoped memory for tpu_custom_call.1']
  #allocation3 [shape = 's32[1]{0:T(128)S(6)}', space=smem, size = 0x200, scoped, tag = 'prefetched SMEM operand 0']
  %s0 = inlined_call_operand.<no memory space> [shape: s32[1], index: 0, kind: input, shape index: {}]
  %s1 = inlined_call_operand.hbm [shape: bf16[128,256], index: 1, kind: input, shape index: {}]
  %s2 = inlined_call_operand.vmem [shape: f32[1,256], index: 2, kind: input, shape index: {}]
  %s3 = inlined_call_operand.hbm [shape: f32[8,128], index: 3, kind: output, shape index: {}]
  %s4 = sld [smem:[#allocation0]]
  $region22: #{tpu_custom_call.1} parent=0
    _
  %s6 = ssub.s32 1, %s4
  %s7 = scalar_select 0, %s6, %s4
  %8 = sst [smem:[#allocation3]] %s0
  $region1: #{tpu_custom_call.1} parent=0
    #allocation4 [shape = 'u8[65536]{0}', space=vmem, size = 0x10000, scoped, tag = 'input window, operand 1, single buffered']
    #allocation5 [shape = 's32[1]{0}', space=sflag, size = 0x4, scoped, tag = 'scoped memory for tpu_custom_call.1']
    #allocation6 [shape = 's32[1]{0}', space=sflag, size = 0x4, scoped, tag = 'scoped memory for tpu_custom_call.1']
    #allocation7 [shape = 'u8[4096]{0}', space=vmem, size = 0x1000, scoped, tag = 'output window, operand 0, single buffered']
    %9 = vsyncpa [#allocation5], 0
    %10 = vsyncpa [#allocation6], 0
    // Predicated region
    $region2: #{tpu_custom_call.1} parent=1 // pred_check
      _
    $region3: #{tpu_custom_call.1} parent=1 // pred_check_branch
      %12 = sbr.rel (0) target = $region5
    $region4: #{tpu_custom_call.1} parent=1 // pred_region
      %s14 = ssub.s32 2048, 2048
      %15 = vsyncadd [#allocation5], %s14
      %s16 = sshll.u32 [#allocation4], 4
      %s17 = int_to_ptr.vmem [resolvable:$true] %s16
      %22 = dma.hbm_to_vmem [thread:$0]  %s1, 2048, %s17, [#allocation5], 128, 128, 8
    $region5: #{tpu_custom_call.1} parent=1 // pred_fallthru
      _
    // Predicated region
    $region6: #{tpu_custom_call.1} parent=1 // pred_check
      _
    $region7: #{tpu_custom_call.1} parent=1 // pred_check_branch
      %24 = sbr.rel (0) target = $region9
    $region8: #{tpu_custom_call.1} parent=1 // pred_region
      _
    $region9: #{tpu_custom_call.1} parent=1 // pred_fallthru
      _
    // Predicated region
    $region10: #{tpu_custom_call.1} parent=1 // pred_check
      _
    $region11: #{tpu_custom_call.1} parent=1 // pred_check_branch
      %26 = sbr.rel (0) target = $region13
    $region12: #{tpu_custom_call.1} parent=1 // pred_region
      %27 = dma.done [#allocation5], 2048
    $region13: #{tpu_custom_call.1} parent=1 // pred_fallthru
      _
    %s29 = sld [smem:[#allocation3]]
    %s30 = smul.u32 0, 8
    %v31 = vlaneseq
    %v32 = vshrl.u32 %v31, 7
    %v33 = vlaneseq
    %v34 = vand.u32 %v33, 127
    %v35 = vstv %s30
    %v36 = vadd.s32 %v32, %v35
    %v37 = vmul.u32 %v36, 128
    %v38 = vadd.s32 %v37, %v34
    %s39 = sshrl.u32 %s29, 16
    %s40 = sxor.u32 %s29, %s39
    %s41 = smul.u32 %s40, 2146121005
    %s42 = sshrl.u32 %s41, 15
    %s43 = sxor.u32 %s41, %s42
    %s44 = smul.u32 %s43, 2221713035
    %s45 = sshrl.u32 %s44, 16
    %s46 = sxor.u32 %s44, %s45
    %v47 = vstv %s46
    %v48 = vxor.u32 %v38, %v47
    %v49 = vshrl.u32 %v48, 16
    %v50 = vxor.u32 %v48, %v49
    %v51 = vmul.u32 %v50, 2146121005
    %v52 = vshrl.u32 %v51, 15
    %v53 = vxor.u32 %v51, %v52
    %v54 = vmul.u32 %v53, 2221713035
    %v55 = vshrl.u32 %v54, 16
    %v56 = vxor.u32 %v54, %v55
    %v57 = vshrl.u32 %v56, 8
    %v58 = vcvt.s32.f32 %v57
    %v59 = vmul.f32 %v58, 5.9604645e-08
    %v60 = vpack.c.bf16 %v59, %v59
    %v61 = vld [vmem:[#allocation4] sm:$0xf]
    %v62 = vld [vmem:[#allocation4 + $0x8] sm:$0xf]
    %v63 = vld [vmem:[#allocation4 + $0x10] sm:$0xf]
    %v64 = vld [vmem:[#allocation4 + $0x18] sm:$0xf]
    %v65 = vld [vmem:[#allocation4 + $0x20] sm:$0xf]
    %v66 = vld [vmem:[#allocation4 + $0x28] sm:$0xf]
    %v67 = vld [vmem:[#allocation4 + $0x30] sm:$0xf]
    %v68 = vld [vmem:[#allocation4 + $0x38] sm:$0xf]
    %v69 = vld [vmem:[#allocation4 + $0x40] sm:$0xf]
    %v70 = vld [vmem:[#allocation4 + $0x48] sm:$0xf]
    %v71 = vld [vmem:[#allocation4 + $0x50] sm:$0xf]
    %v72 = vld [vmem:[#allocation4 + $0x58] sm:$0xf]
    %v73 = vld [vmem:[#allocation4 + $0x60] sm:$0xf]
    %v74 = vld [vmem:[#allocation4 + $0x68] sm:$0xf]
    %v75 = vld [vmem:[#allocation4 + $0x70] sm:$0xf]
    %v76 = vld [vmem:[#allocation4 + $0x78] sm:$0xf]
    %v77 = vld [vmem:[%s2] sm:$0x1]
    %v79 = vlaneseq
    %v80 = vshrl.u32 %v79, 7
    %v81 = vsub.s32 0, %v80
    %v82 = vrot.slane %v77, %v81
    %v100 = vunpack.c.l.b16 %v61
    %v101 = vunpack.c.l.b16 %v62
    %v102 = vunpack.c.l.b16 %v63
    %v103 = vunpack.c.l.b16 %v64
    %v104 = vunpack.c.l.b16 %v65
    %v105 = vunpack.c.l.b16 %v66
    %v106 = vunpack.c.l.b16 %v67
    %v107 = vunpack.c.l.b16 %v68
    %v108 = vunpack.c.l.b16 %v69
    %v109 = vunpack.c.l.b16 %v70
    %v110 = vunpack.c.l.b16 %v71
    %v111 = vunpack.c.l.b16 %v72
    %v112 = vunpack.c.l.b16 %v73
    %v113 = vunpack.c.l.b16 %v74
    %v114 = vunpack.c.l.b16 %v75
    %v115 = vunpack.c.l.b16 %v76
    %v116 = vpack.c.b16 %v101, %v100
    %v117 = vpack.c.b16 %v103, %v102
    %v118 = vpack.c.b16 %v105, %v104
    %v119 = vpack.c.b16 %v107, %v106
    %v120 = vpack.c.b16 %v109, %v108
    %v121 = vpack.c.b16 %v111, %v110
    %v122 = vpack.c.b16 %v113, %v112
    %v123 = vpack.c.b16 %v115, %v114
    %132 = vmatprep.subr.bf16.mxu0 0
    %133 = vmatpush1.bf16.msra.mxu0 %v116
    %134 = vmatprep.subr.bf16.mxu0 0
    %135 = vmatpush1.bf16.msra.mxu0 %v117
    %136 = vmatprep.subr.bf16.mxu0 0
    %137 = vmatpush1.bf16.msra.mxu0 %v118
    %138 = vmatprep.subr.bf16.mxu0 0
    %139 = vmatpush1.bf16.msra.mxu0 %v119
    %140 = vmatprep.subr.bf16.mxu0 0
    %141 = vmatpush1.bf16.msra.mxu0 %v120
    %142 = vmatprep.subr.bf16.mxu0 0
    %143 = vmatpush1.bf16.msra.mxu0 %v121
    %144 = vmatprep.subr.bf16.mxu0 0
    %145 = vmatpush1.bf16.msra.mxu0 %v122
    %146 = vmatprep.subr.bf16.mxu0 0
    %147 = vmatpush1.bf16.msra.mxu0 %v123
    %148 = vmatprep.subr.bf16.mxu0 0
    %149 = vmatpush1.bf16.msra.mxu0 0
    %150 = vmatprep.subr.bf16.mxu0 0
    %151 = vmatpush1.bf16.msra.mxu0 0
    %152 = vmatprep.subr.bf16.mxu0 0
    %153 = vmatpush1.bf16.msra.mxu0 0
    %154 = vmatprep.subr.bf16.mxu0 0
    %155 = vmatpush1.bf16.msra.mxu0 0
    %156 = vmatprep.subr.bf16.mxu0 0
    %157 = vmatpush1.bf16.msra.mxu0 0
    %158 = vmatprep.subr.bf16.mxu0 0
    %159 = vmatpush1.bf16.msra.mxu0 0
    %160 = vmatprep.subr.bf16.mxu0 0
    %161 = vmatpush1.bf16.msra.mxu0 0
    %162 = vmatprep.subr.bf16.mxu0 0
    %163 = vmatpush1.bf16.msra.mxu0 0
    %164 = vmatprep.mubr.bf16.mxu0 0
    %165 = vmatmul.mubr.bf16.gmra.mrb[0].mxu0 %v60
    %v166 = vpop.f32.mrb[0].mxu0
    %v167 = vadd.f32 %v82, %v166
    %v168 = vpop.f32.mrb[0].mxu0
    %v169 = vpop.f32.mrb[0].mxu0
    %v170 = vpop.f32.mrb[0].mxu0
    %171 = vdwg.mxu0
    %vm172 = vcmp.gt.f32.partialorder %v167, 0.0
    %v173 = vmul.f32 %v167, 0.01
    %v174 = vsel %vm172, %v167, %v173
    %s175 = sadd.s32 %s29, 2654435769
    %s176 = sshrl.u32 %s175, 16
    %s177 = sxor.u32 %s175, %s176
    %s178 = smul.u32 %s177, 2146121005
    %s179 = sshrl.u32 %s178, 15
    %s180 = sxor.u32 %s178, %s179
    %s181 = smul.u32 %s180, 2221713035
    %s182 = sshrl.u32 %s181, 16
    %s183 = sxor.u32 %s181, %s182
    %v184 = vstv %s183
    %v185 = vxor.u32 %v38, %v184
    %v186 = vshrl.u32 %v185, 16
    %v187 = vxor.u32 %v185, %v186
    %v188 = vmul.u32 %v187, 2146121005
    %v189 = vshrl.u32 %v188, 15
    %v190 = vxor.u32 %v188, %v189
    %v191 = vmul.u32 %v190, 2221713035
    %v192 = vshrl.u32 %v191, 16
    %v193 = vxor.u32 %v191, %v192
    %v194 = vshrl.u32 %v193, 8
    %vm195 = vcmp.ge.s32.totalorder %v194, 1677722
    %v196 = vmul.f32 %v174, 1.1111112
    %v197 = vsel %vm195, %v196, 0.0
    %v198 = vpack.c.bf16 %v197, %v197
    %v199 = vld [vmem:[#allocation4 + $0x4] sm:$0xf]
    %v200 = vld [vmem:[#allocation4 + $0xc] sm:$0xf]
    %v201 = vld [vmem:[#allocation4 + $0x14] sm:$0xf]
    %v202 = vld [vmem:[#allocation4 + $0x1c] sm:$0xf]
    %v203 = vld [vmem:[#allocation4 + $0x24] sm:$0xf]
    %v204 = vld [vmem:[#allocation4 + $0x2c] sm:$0xf]
    %v205 = vld [vmem:[#allocation4 + $0x34] sm:$0xf]
    %v206 = vld [vmem:[#allocation4 + $0x3c] sm:$0xf]
    %v207 = vld [vmem:[#allocation4 + $0x44] sm:$0xf]
    %v208 = vld [vmem:[#allocation4 + $0x4c] sm:$0xf]
    %v209 = vld [vmem:[#allocation4 + $0x54] sm:$0xf]
    %v210 = vld [vmem:[#allocation4 + $0x5c] sm:$0xf]
    %v211 = vld [vmem:[#allocation4 + $0x64] sm:$0xf]
    %v212 = vld [vmem:[#allocation4 + $0x6c] sm:$0xf]
    %v213 = vld [vmem:[#allocation4 + $0x74] sm:$0xf]
    %v214 = vld [vmem:[#allocation4 + $0x7c] sm:$0xf]
    %v215 = vld [vmem:[%s2 + $0x1] sm:$0x1]
    %v217 = vlaneseq
    %v218 = vshrl.u32 %v217, 7
    %v219 = vsub.s32 0, %v218
    %v220 = vrot.slane %v215, %v219
    %v238 = vunpack.c.l.b16 %v199
    %v239 = vunpack.c.l.b16 %v200
    %v240 = vunpack.c.l.b16 %v201
    %v241 = vunpack.c.l.b16 %v202
    %v242 = vunpack.c.l.b16 %v203
    %v243 = vunpack.c.l.b16 %v204
    %v244 = vunpack.c.l.b16 %v205
    %v245 = vunpack.c.l.b16 %v206
    %v246 = vunpack.c.l.b16 %v207
    %v247 = vunpack.c.l.b16 %v208
    %v248 = vunpack.c.l.b16 %v209
    %v249 = vunpack.c.l.b16 %v210
    %v250 = vunpack.c.l.b16 %v211
    %v251 = vunpack.c.l.b16 %v212
    %v252 = vunpack.c.l.b16 %v213
    %v253 = vunpack.c.l.b16 %v214
    %v254 = vpack.c.b16 %v239, %v238
    %v255 = vpack.c.b16 %v241, %v240
    %v256 = vpack.c.b16 %v243, %v242
    %v257 = vpack.c.b16 %v245, %v244
    %v258 = vpack.c.b16 %v247, %v246
    %v259 = vpack.c.b16 %v249, %v248
    %v260 = vpack.c.b16 %v251, %v250
    %v261 = vpack.c.b16 %v253, %v252
    %270 = vmatprep.subr.bf16.mxu0 0
    %271 = vmatpush1.bf16.msra.mxu0 %v254
    %272 = vmatprep.subr.bf16.mxu0 0
    %273 = vmatpush1.bf16.msra.mxu0 %v255
    %274 = vmatprep.subr.bf16.mxu0 0
    %275 = vmatpush1.bf16.msra.mxu0 %v256
    %276 = vmatprep.subr.bf16.mxu0 0
    %277 = vmatpush1.bf16.msra.mxu0 %v257
    %278 = vmatprep.subr.bf16.mxu0 0
    %279 = vmatpush1.bf16.msra.mxu0 %v258
    %280 = vmatprep.subr.bf16.mxu0 0
    %281 = vmatpush1.bf16.msra.mxu0 %v259
    %282 = vmatprep.subr.bf16.mxu0 0
    %283 = vmatpush1.bf16.msra.mxu0 %v260
    %284 = vmatprep.subr.bf16.mxu0 0
    %285 = vmatpush1.bf16.msra.mxu0 %v261
    %286 = vmatprep.subr.bf16.mxu0 0
    %287 = vmatpush1.bf16.msra.mxu0 0
    %288 = vmatprep.subr.bf16.mxu0 0
    %289 = vmatpush1.bf16.msra.mxu0 0
    %290 = vmatprep.subr.bf16.mxu0 0
    %291 = vmatpush1.bf16.msra.mxu0 0
    %292 = vmatprep.subr.bf16.mxu0 0
    %293 = vmatpush1.bf16.msra.mxu0 0
    %294 = vmatprep.subr.bf16.mxu0 0
    %295 = vmatpush1.bf16.msra.mxu0 0
    %296 = vmatprep.subr.bf16.mxu0 0
    %297 = vmatpush1.bf16.msra.mxu0 0
    %298 = vmatprep.subr.bf16.mxu0 0
    %299 = vmatpush1.bf16.msra.mxu0 0
    %300 = vmatprep.subr.bf16.mxu0 0
    %301 = vmatpush1.bf16.msra.mxu0 0
    %302 = vmatprep.mubr.bf16.mxu0 0
    %303 = vmatmul.mubr.bf16.gmra.mrb[0].mxu0 %v198
    %v304 = vpop.f32.mrb[0].mxu0
    %v305 = vadd.f32 %v220, %v304
    %v306 = vpop.f32.mrb[0].mxu0
    %v307 = vpop.f32.mrb[0].mxu0
    %v308 = vpop.f32.mrb[0].mxu0
    %309 = vdwg.mxu0
    %310 = vst [vmem:[#allocation7] sm:$0xff] %v305
    // Predicated region
    $region14: #{tpu_custom_call.1} parent=1 // pred_check
      _
    $region15: #{tpu_custom_call.1} parent=1 // pred_check_branch
      %312 = sbr.rel (0) target = $region17
    $region16: #{tpu_custom_call.1} parent=1 // pred_region
      %s314 = ssub.s32 128, 128
      %315 = vsyncadd [#allocation6], %s314
      %s317 = sshll.u32 [#allocation7], 4
      %s318 = int_to_ptr.vmem [resolvable:$true] %s317
      %320 = dma.vmem_to_hbm [thread:$0]  %s318, 128, %s3, [#allocation6]
    $region17: #{tpu_custom_call.1} parent=1 // pred_fallthru
      _
    // Predicated region
    $region18: #{tpu_custom_call.1} parent=1 // pred_check
      _
    $region19: #{tpu_custom_call.1} parent=1 // pred_check_branch
      %322 = sbr.rel (0) target = $region21
    $region20: #{tpu_custom_call.1} parent=1 // pred_region
      %323 = dma.done [#allocation6], 128
    $region21: #{tpu_custom_call.1} parent=1 // pred_fallthru
      _
    %324 = vsyncpa [#allocation5], 1
    %325 = vsyncpa [#allocation6], 1

</llo_original>
